<compile_context>
chip_gen: v5e
topology: v5e:2x2
jax: 0.10.0
libtpu: 0.0.40
codegen_flags: <defaults>
</compile_context>

<pallas_src>
import jax
import jax.numpy as jnp
from jax.experimental import pallas as pl
from jax.experimental.pallas import tpu as pltpu


def _round_up(v, m):
    return ((v + m - 1) // m) * m


def _cdiv(a, b):
    return -(-a // b)


def _sigmoid(z):
    # sigmoid(z) == 0.5 * tanh(0.5 * z) + 0.5 : single EUP transcendental, no divide.
    return 0.5 * jnp.tanh(0.5 * z) + 0.5


def _mlp_kernel(xt_ref, w1t_ref, b1_ref, w2t_ref, b2_ref, w3_ref, b3_ref, o_ref):
    # Batch lives on the lane axis for every intermediate in this kernel.
    xt = xt_ref[...].astype(jnp.bfloat16)                      # (in_dim, TILE_B); in-kernel cast
    # Layer 1 (bf16 MXU operands, f32 accumulate): z1^T = W1^T @ x^T
    z1 = jnp.dot(w1t_ref[...], xt,
                 preferred_element_type=jnp.float32) + b1_ref[...]      # (20, TILE_B)
    h1 = _sigmoid(z1)
    # Layer 2 in f32 (tiny matmul; avoids h1->bf16 precision loss).
    z2 = jnp.dot(w2t_ref[...], h1,
                 preferred_element_type=jnp.float32) + b2_ref[...]      # (10, TILE_B)
    h2 = _sigmoid(z2)
    # Layer 3 (out_features == 1): VPU weighted multiply + sublane sum over 10 rows.
    # Result (1, TILE_B) is lane-dense -> unmasked store.
    z3 = jnp.sum(h2 * w3_ref[...], axis=0, keepdims=True) + b3_ref[0]   # (1, TILE_B)
    o_ref[...] = _sigmoid(z3).astype(o_ref.dtype)


def logistic_model_forward(x, params):
    """x: (B, in_dim) float32. params: w1 (in,20), b1 (1,20), w2 (20,10), b2 (1,10),
    w3 (10,1), b3 (1,1). Returns (B, 1) float32 matching the PyTorch forward."""
    w1, b1, w2, b2, w3, b3 = (
        params["w1"], params["b1"], params["w2"],
        params["b2"], params["w3"], params["b3"],
    )
    B, in_dim = x.shape

    # Big tiles amortize per-grid-step overhead; cap so grid >= 8 steps at large B for
    # the v7x 2-TensorCore "parallel" split (no-op on v5e/v6e). Multiple of 256 keeps
    # the lane-axis output block aligned.
    TILE_B = min(8192, _round_up(max(_cdiv(B, 8), 1), 256))
    B_pad = _round_up(B, TILE_B)

    # Batch-on-lanes layout: one wrapper-side transpose of x (stays f32; bf16 cast is
    # done inside the kernel). Weight/bias transposes are a few KB -> free.
    xt = x.astype(jnp.float32).T                               # (in_dim, B)
    if B_pad != B:
        xt = jnp.pad(xt, ((0, 0), (0, B_pad - B)))             # zero cols: numerically safe

    w1t = w1.T.astype(jnp.bfloat16)                            # (20, in_dim) bf16 MXU operand
    b1c = b1.reshape(-1, 1).astype(jnp.float32)                # (20, 1) lane-broadcast column
    w2t = w2.T.astype(jnp.float32)                             # (10, 20) f32 (parity)
    b2c = b2.reshape(-1, 1).astype(jnp.float32)                # (10, 1)
    w3c = w3.reshape(-1, 1).astype(jnp.float32)                # (10, 1) weighted-sum column
    b3s = b3.reshape(-1).astype(jnp.float32)                   # (1,) SMEM scalar

    grid = (B_pad // TILE_B,)

    out = pl.pallas_call(
        _mlp_kernel,
        out_shape=jax.ShapeDtypeStruct((1, B_pad), jnp.float32),
        grid=grid,
        in_specs=[
            # x^T: streamed (in_dim, TILE_B) tiles, double-buffered by the pipeline.
            pl.BlockSpec((in_dim, TILE_B), lambda i: (0, i)),
            # Weights / biases: constant index_map -> VMEM-resident across grid steps.
            pl.BlockSpec(w1t.shape, lambda i: (0, 0)),
            pl.BlockSpec(b1c.shape, lambda i: (0, 0)),
            pl.BlockSpec(w2t.shape, lambda i: (0, 0)),
            pl.BlockSpec(b2c.shape, lambda i: (0, 0)),
            pl.BlockSpec(w3c.shape, lambda i: (0, 0)),
            # Final-layer bias as an SMEM scalar.
            pl.BlockSpec(memory_space=pltpu.MemorySpace.SMEM),
        ],
        # Lane-dense output: batch on the lane axis, TILE_B % 128 == 0.
        out_specs=pl.BlockSpec((1, TILE_B), lambda i: (0, i)),
        compiler_params=pltpu.CompilerParams(
            dimension_semantics=("parallel",),   # megacore split on v7x
        ),
    )(xt, w1t, b1c, w2t, b2c, w3c, b3s)

    return out[0, :B].reshape(B, 1)


def init_params(key, in_dim):
    # Deterministic synthetic init (PyTorch-style uniform fan-in bound).
    # Weights stored as (in_features, out_features) so the reference computes x @ W + b.
    def linear_init(k, fan_in, fan_out):
        k_w, k_b = jax.random.split(k)
        bound = 1.0 / jnp.sqrt(fan_in)
        w = jax.random.uniform(k_w, (fan_in, fan_out), jnp.float32, -bound, bound)
        b = jax.random.uniform(k_b, (1, fan_out), jnp.float32, -bound, bound)
        return w, b

    k1, k2, k3 = jax.random.split(key, 3)
    w1, b1 = linear_init(k1, in_dim, 20)
    w2, b2 = linear_init(k2, 20, 10)
    w3, b3 = linear_init(k3, 10, 1)
    return {"w1": w1, "b1": b1, "w2": w2, "b2": b2, "w3": w3, "b3": b3}


if __name__ == "__main__":
    key = jax.random.PRNGKey(0)
    k_x, k_p = jax.random.split(key)

    in_dim = 32
    params = init_params(k_p, in_dim)

    # Pure-JAX f32 reference; only layer-1 MXU operands are bf16 in the kernel.
    def ref(x, p):
        h1 = jax.nn.sigmoid(x @ p["w1"] + p["b1"])
        h2 = jax.nn.sigmoid(h1 @ p["w2"] + p["b2"])
        return jax.nn.sigmoid(h2 @ p["w3"] + p["b3"])

    # batch=8 -> single grid step; batch=300 -> 2 grid steps (exercises the batch pipeline).
    for batch in (8, 300):
        x = jax.random.normal(jax.random.fold_in(k_x, batch), (batch, in_dim),
                              dtype=jnp.float32)
        y = logistic_model_forward(x, params)
        jax.block_until_ready(y)
        y_ref = ref(x, params)
        assert y.shape == (batch, 1)
        assert jnp.allclose(y, y_ref, atol=1e-2, rtol=1e-2), (
            f"batch={batch}: max abs diff = {jnp.max(jnp.abs(y - y_ref))}")

    print("KERNEL_OK")
</pallas_src>

<mosaic_0001>
module attributes {stable_mosaic.version = 11 : i64} {
  func.func @_mlp_kernel(%arg0: i32, %arg1: memref<32x256xf32, #tpu.memory_space<vmem>>, %arg2: memref<20x32xbf16, #tpu.memory_space<vmem>>, %arg3: memref<20x1xf32, #tpu.memory_space<vmem>>, %arg4: memref<10x20xf32, #tpu.memory_space<vmem>>, %arg5: memref<10x1xf32, #tpu.memory_space<vmem>>, %arg6: memref<10x1xf32, #tpu.memory_space<vmem>>, %arg7: memref<1xf32, #tpu.memory_space<smem>>, %arg8: memref<1x256xf32, #tpu.memory_space<vmem>>) attributes {dimension_semantics = [#tpu.dimension_semantics<parallel>], iteration_bounds = array<i64: 1>, scalar_prefetch = 0 : i64, scratch_operands = 0 : i64, tpu.core_type = #tpu.core_type<tc>, window_params = [{transform_indices = @transform_0, window_bounds = array<i64: 32, 256>}, {pipeline_mode = #tpu.pipeline_mode<synchronous>, transform_indices = @transform_1, window_bounds = array<i64: 20, 32>}, {pipeline_mode = #tpu.pipeline_mode<synchronous>, transform_indices = @transform_2, window_bounds = array<i64: 20, 1>}, {pipeline_mode = #tpu.pipeline_mode<synchronous>, transform_indices = @transform_3, window_bounds = array<i64: 10, 20>}, {pipeline_mode = #tpu.pipeline_mode<synchronous>, transform_indices = @transform_4, window_bounds = array<i64: 10, 1>}, {pipeline_mode = #tpu.pipeline_mode<synchronous>, transform_indices = @transform_5, window_bounds = array<i64: 10, 1>}, {transform_indices = @transform_6, window_bounds = array<i64: 1>}, {transform_indices = @transform_7, window_bounds = array<i64: 1, 256>}]} {
    %c0 = arith.constant 0 : index
    %c0_0 = arith.constant 0 : index
    %0 = vector.load %arg1[%c0, %c0_0] : memref<32x256xf32, #tpu.memory_space<vmem>>, vector<32x256xf32>
    %1 = arith.truncf %0 : vector<32x256xf32> to vector<32x256xbf16>
    %c0_1 = arith.constant 0 : index
    %c0_2 = arith.constant 0 : index
    %2 = vector.load %arg2[%c0_1, %c0_2] : memref<20x32xbf16, #tpu.memory_space<vmem>>, vector<20x32xbf16>
    %cst = arith.constant dense<0.000000e+00> : vector<20x256xf32>
    %3 = tpu.matmul %2, %1, %cst {dimension_numbers = #tpu.dot_dimension_numbers<[1], [0], [0], [1], [0, 0, 1, 1], [], []>} : vector<20x32xbf16>, vector<32x256xbf16>, vector<20x256xf32> -> vector<20x256xf32>
    %c0_3 = arith.constant 0 : index
    %c0_4 = arith.constant 0 : index
    %4 = vector.load %arg3[%c0_3, %c0_4] : memref<20x1xf32, #tpu.memory_space<vmem>>, vector<20x1xf32>
    %5 = vector.broadcast %4 : vector<20x1xf32> to vector<20x256xf32>
    %6 = arith.addf %3, %5 : vector<20x256xf32>
    %cst_5 = arith.constant 5.000000e-01 : f32
    %7 = vector.broadcast %cst_5 : f32 to vector<20x256xf32>
    %8 = arith.mulf %7, %6 : vector<20x256xf32>
    %9 = math.tanh %8 : vector<20x256xf32>
    %cst_6 = arith.constant 5.000000e-01 : f32
    %10 = vector.broadcast %cst_6 : f32 to vector<20x256xf32>
    %11 = arith.mulf %10, %9 : vector<20x256xf32>
    %cst_7 = arith.constant 5.000000e-01 : f32
    %12 = vector.broadcast %cst_7 : f32 to vector<20x256xf32>
    %13 = arith.addf %11, %12 : vector<20x256xf32>
    %c0_8 = arith.constant 0 : index
    %c0_9 = arith.constant 0 : index
    %14 = vector.load %arg4[%c0_8, %c0_9] : memref<10x20xf32, #tpu.memory_space<vmem>>, vector<10x20xf32>
    %cst_10 = arith.constant dense<0.000000e+00> : vector<10x256xf32>
    %15 = tpu.matmul %14, %13, %cst_10 {dimension_numbers = #tpu.dot_dimension_numbers<[1], [0], [0], [1], [0, 0, 1, 1], [], []>} : vector<10x20xf32>, vector<20x256xf32>, vector<10x256xf32> -> vector<10x256xf32>
    %c0_11 = arith.constant 0 : index
    %c0_12 = arith.constant 0 : index
    %16 = vector.load %arg5[%c0_11, %c0_12] : memref<10x1xf32, #tpu.memory_space<vmem>>, vector<10x1xf32>
    %17 = vector.broadcast %16 : vector<10x1xf32> to vector<10x256xf32>
    %18 = arith.addf %15, %17 : vector<10x256xf32>
    %cst_13 = arith.constant 5.000000e-01 : f32
    %19 = vector.broadcast %cst_13 : f32 to vector<10x256xf32>
    %20 = arith.mulf %19, %18 : vector<10x256xf32>
    %21 = math.tanh %20 : vector<10x256xf32>
    %cst_14 = arith.constant 5.000000e-01 : f32
    %22 = vector.broadcast %cst_14 : f32 to vector<10x256xf32>
    %23 = arith.mulf %22, %21 : vector<10x256xf32>
    %cst_15 = arith.constant 5.000000e-01 : f32
    %24 = vector.broadcast %cst_15 : f32 to vector<10x256xf32>
    %25 = arith.addf %23, %24 : vector<10x256xf32>
    %c0_16 = arith.constant 0 : index
    %c0_17 = arith.constant 0 : index
    %26 = vector.load %arg6[%c0_16, %c0_17] : memref<10x1xf32, #tpu.memory_space<vmem>>, vector<10x1xf32>
    %27 = vector.broadcast %26 : vector<10x1xf32> to vector<10x256xf32>
    %28 = arith.mulf %25, %27 : vector<10x256xf32>
    %cst_18 = arith.constant dense<0.000000e+00> : vector<256xf32>
    %29 = vector.multi_reduction <add>, %28, %cst_18 [0] : vector<10x256xf32> to vector<256xf32>
    %30 = vector.shape_cast %29 : vector<256xf32> to vector<1x256xf32>
    %c0_19 = arith.constant 0 : index
    %31 = memref.load %arg7[%c0_19] : memref<1xf32, #tpu.memory_space<smem>>
    %32 = vector.broadcast %31 : f32 to vector<1x256xf32>
    %33 = arith.addf %30, %32 : vector<1x256xf32>
    %cst_20 = arith.constant 5.000000e-01 : f32
    %34 = vector.broadcast %cst_20 : f32 to vector<1x256xf32>
    %35 = arith.mulf %34, %33 : vector<1x256xf32>
    %36 = math.tanh %35 : vector<1x256xf32>
    %cst_21 = arith.constant 5.000000e-01 : f32
    %37 = vector.broadcast %cst_21 : f32 to vector<1x256xf32>
    %38 = arith.mulf %37, %36 : vector<1x256xf32>
    %cst_22 = arith.constant 5.000000e-01 : f32
    %39 = vector.broadcast %cst_22 : f32 to vector<1x256xf32>
    %40 = arith.addf %38, %39 : vector<1x256xf32>
    %c0_23 = arith.constant 0 : index
    %c0_24 = arith.constant 0 : index
    %41 = vector.load %arg8[%c0_23, %c0_24] : memref<1x256xf32, #tpu.memory_space<vmem>>, vector<1x256xf32>
    tpu.vector_store %arg8[%c0_23, %c0_24], %40 {strides = array<i32>} : memref<1x256xf32, #tpu.memory_space<vmem>>, vector<1x256xf32>,
    return
  }
  func.func @transform_0(%arg0: i32) -> (i32, i32) {
    %c0_i32 = arith.constant 0 : i32
    %c0_i32_0 = arith.constant 0 : i32
    return %c0_i32, %arg0 : i32, i32
  }
  func.func @transform_1(%arg0: i32) -> (i32, i32) {
    %c0_i32 = arith.constant 0 : i32
    %c0_i32_0 = arith.constant 0 : i32
    %c0_i32_1 = arith.constant 0 : i32
    return %c0_i32, %c0_i32_0 : i32, i32
  }
  func.func @transform_2(%arg0: i32) -> (i32, i32) {
    %c0_i32 = arith.constant 0 : i32
    %c0_i32_0 = arith.constant 0 : i32
    %c0_i32_1 = arith.constant 0 : i32
    return %c0_i32, %c0_i32_0 : i32, i32
  }
  func.func @transform_3(%arg0: i32) -> (i32, i32) {
    %c0_i32 = arith.constant 0 : i32
    %c0_i32_0 = arith.constant 0 : i32
    %c0_i32_1 = arith.constant 0 : i32
    return %c0_i32, %c0_i32_0 : i32, i32
  }
  func.func @transform_4(%arg0: i32) -> (i32, i32) {
    %c0_i32 = arith.constant 0 : i32
    %c0_i32_0 = arith.constant 0 : i32
    %c0_i32_1 = arith.constant 0 : i32
    return %c0_i32, %c0_i32_0 : i32, i32
  }
  func.func @transform_5(%arg0: i32) -> (i32, i32) {
    %c0_i32 = arith.constant 0 : i32
    %c0_i32_0 = arith.constant 0 : i32
    %c0_i32_1 = arith.constant 0 : i32
    return %c0_i32, %c0_i32_0 : i32, i32
  }
  func.func @transform_6(%arg0: i32) -> i32 {
    %c0_i32 = arith.constant 0 : i32
    %c0_i32_0 = arith.constant 0 : i32
    return %c0_i32 : i32
  }
  func.func @transform_7(%arg0: i32) -> (i32, i32) {
    %c0_i32 = arith.constant 0 : i32
    %c0_i32_0 = arith.constant 0 : i32
    return %c0_i32, %arg0 : i32, i32
  }
}

</mosaic_0001>

<llo_original>
// kernel: tpu_custom_call.1
$region0: #{tpu_custom_call.1}
  #allocation0 [shape = 'u32[]', space=smem, size = 0x4, offset = 0x4, fixed_abs, tag = 'smem constant byte address 0x4 - core index']
  #allocation1 [shape = 'u32[72,128]{1,0:T(1,128)}', space=vmem, size = 0x9000, scoped, tag = 'internal scratch']
  #allocation2 [shape = 'f32[1]{0:T(128)S(6)}', space=smem, size = 0x200, scoped, tag = 'scoped memory for tpu_custom_call.1']
  %s0 = inlined_call_operand.hbm [shape: f32[32,256], index: 0, kind: input, shape index: {}]
  %s1 = inlined_call_operand.vmem [shape: bf16[20,32], index: 1, kind: input, shape index: {}]
  %s2 = inlined_call_operand.vmem [shape: f32[20,1], index: 2, kind: input, shape index: {}]
  %s3 = inlined_call_operand.vmem [shape: f32[10,20], index: 3, kind: input, shape index: {}]
  %s4 = inlined_call_operand.vmem [shape: f32[10,1], index: 4, kind: input, shape index: {}]
  %s5 = inlined_call_operand.vmem [shape: f32[10,1], index: 5, kind: input, shape index: {}]
  %s6 = inlined_call_operand.<no memory space> [shape: f32[1], index: 6, kind: input, shape index: {}]
  %s7 = inlined_call_operand.hbm [shape: f32[1,256], index: 7, kind: output, shape index: {}]
  %s8 = sld [smem:[#allocation0]]
  $region42: #{tpu_custom_call.1} parent=0
    _
  %s10 = ssub.s32 1, %s8
  %s11 = scalar_select 0, %s10, %s8
  %12 = sst [smem:[#allocation2]] %s6
  $region1: #{tpu_custom_call.1} parent=0
    #allocation3 [shape = 'u8[32768]{0}', space=vmem, size = 0x8000, scoped, tag = 'input window, operand 0, single buffered']
    #allocation4 [shape = 's32[1]{0}', space=sflag, size = 0x4, scoped, tag = 'scoped memory for tpu_custom_call.1']
    #allocation5 [shape = 's32[1]{0}', space=sflag, size = 0x4, scoped, tag = 'scoped memory for tpu_custom_call.1']
    #allocation6 [shape = 'u8[1024]{0}', space=vmem, size = 0x400, scoped, tag = 'output window, operand 0, single buffered']
    %13 = vsyncpa [#allocation4], 0
    %14 = vsyncpa [#allocation5], 0
    // Predicated region
    $region2: #{tpu_custom_call.1} parent=1 // pred_check
      _
    $region3: #{tpu_custom_call.1} parent=1 // pred_check_branch
      %16 = sbr.rel (0) target = $region5
    $region4: #{tpu_custom_call.1} parent=1 // pred_region
      %18 = vsyncadd [#allocation4], 0
      %s19 = sshll.u32 %s0, 4
      %s20 = int_to_ptr.hbm [resolvable:$true] %s19
      %s21 = sshll.u32 [#allocation3], 4
      %s22 = int_to_ptr.vmem [resolvable:$true] %s21
      %27 = dma.hbm_to_vmem [thread:$0]  %s20, 1024, %s22, [#allocation4], 256, 256, 16
    $region5: #{tpu_custom_call.1} parent=1 // pred_fallthru
      _
    // Predicated region
    $region6: #{tpu_custom_call.1} parent=1 // pred_check
      _
    $region7: #{tpu_custom_call.1} parent=1 // pred_check_branch
      %29 = sbr.rel (0) target = $region9
    $region8: #{tpu_custom_call.1} parent=1 // pred_region
      _
    $region9: #{tpu_custom_call.1} parent=1 // pred_fallthru
      _
    // Predicated region
    $region10: #{tpu_custom_call.1} parent=1 // pred_check
      _
    $region11: #{tpu_custom_call.1} parent=1 // pred_check_branch
      %31 = sbr.rel (0) target = $region13
    $region12: #{tpu_custom_call.1} parent=1 // pred_region
      _
    $region13: #{tpu_custom_call.1} parent=1 // pred_fallthru
      _
    // Predicated region
    $region14: #{tpu_custom_call.1} parent=1 // pred_check
      _
    $region15: #{tpu_custom_call.1} parent=1 // pred_check_branch
      %33 = sbr.rel (0) target = $region17
    $region16: #{tpu_custom_call.1} parent=1 // pred_region
      _
    $region17: #{tpu_custom_call.1} parent=1 // pred_fallthru
      _
    // Predicated region
    $region18: #{tpu_custom_call.1} parent=1 // pred_check
      _
    $region19: #{tpu_custom_call.1} parent=1 // pred_check_branch
      %35 = sbr.rel (0) target = $region21
    $region20: #{tpu_custom_call.1} parent=1 // pred_region
      _
    $region21: #{tpu_custom_call.1} parent=1 // pred_fallthru
      _
    // Predicated region
    $region22: #{tpu_custom_call.1} parent=1 // pred_check
      _
    $region23: #{tpu_custom_call.1} parent=1 // pred_check_branch
      %37 = sbr.rel (0) target = $region25
    $region24: #{tpu_custom_call.1} parent=1 // pred_region
      _
    $region25: #{tpu_custom_call.1} parent=1 // pred_fallthru
      _
    // Predicated region
    $region26: #{tpu_custom_call.1} parent=1 // pred_check
      _
    $region27: #{tpu_custom_call.1} parent=1 // pred_check_branch
      %39 = sbr.rel (0) target = $region29
    $region28: #{tpu_custom_call.1} parent=1 // pred_region
      _
    $region29: #{tpu_custom_call.1} parent=1 // pred_fallthru
      _
    // Predicated region
    $region30: #{tpu_custom_call.1} parent=1 // pred_check
      _
    $region31: #{tpu_custom_call.1} parent=1 // pred_check_branch
      %41 = sbr.rel (0) target = $region33
    $region32: #{tpu_custom_call.1} parent=1 // pred_region
      %43 = dma.done [#allocation4], 1024
    $region33: #{tpu_custom_call.1} parent=1 // pred_fallthru
      _
    %v45 = vld [vmem:[#allocation3] sm:$0xff]
    %v46 = vld [vmem:[#allocation3 + $0x8] sm:$0xff]
    %v47 = vld [vmem:[#allocation3 + $0x10] sm:$0xff]
    %v48 = vld [vmem:[#allocation3 + $0x18] sm:$0xff]
    %v49 = vld [vmem:[#allocation3 + $0x20] sm:$0xff]
    %v50 = vld [vmem:[#allocation3 + $0x28] sm:$0xff]
    %v51 = vld [vmem:[#allocation3 + $0x30] sm:$0xff]
    %v52 = vld [vmem:[#allocation3 + $0x38] sm:$0xff]
    %v53 = vpack.c.bf16 %v47, %v45
    %v54 = vpack.c.bf16 %v48, %v46
    %v55 = vpack.c.bf16 %v51, %v49
    %v56 = vpack.c.bf16 %v52, %v50
    %v57 = vld [vmem:[%s1] sm:$0xf]
    %v58 = vld [vmem:[%s1 + $0x4] sm:$0xf]
    %v59 = vld [vmem:[%s1 + $0x8] sm:$0x3]
    %v60 = vld [vmem:[%s2] sm:$0xff]
    %v61 = vld [vmem:[%s2 + $0x8] sm:$0xff]
    %v62 = vld [vmem:[%s2 + $0x10] sm:$0xf]
    %64 = vset.pattern.permute.xlu0 0
    %65 = vperm.xlu0 %64, %v60
    %v66 = vpop.permute.xlu0 %65
    %69 = vset.pattern.permute.xlu0 0
    %70 = vperm.xlu0 %69, %v61
    %v71 = vpop.permute.xlu0 %70
    %74 = vset.pattern.permute.xlu0 0
    %75 = vperm.xlu0 %74, %v62
    %v76 = vpop.permute.xlu0 %75
    %v81 = vunpack.c.l.b16 %v57
    %v82 = vunpack.c.l.b16 %v58
    %v83 = vunpack.c.l.b16 %v59
    %v84 = vpack.c.b16 %v82, %v81
    %v85 = vpack.c.b16 %v83, %v83
    %vm86 = vcmask 261120
    %v88 = vsel %vm86, %v84, 0
    %v91 = vsel %vm86, %v85, 0
    %93 = vmatpush.bf16.msra.mxu0 0
    %94 = vmatpush.bf16.msra.mxu0 0
    %95 = vmatpush.bf16.msra.mxu0 0
    %96 = vmatpush.bf16.msra.mxu0 0
    %97 = vmatpush.bf16.msra.mxu0 0
    %98 = vmatpush.bf16.msra.mxu0 0
    %99 = vmatpush.bf16.msra.mxu0 %v55
    %100 = vmatpush.bf16.msra.mxu0 %v53
    %101 = vmatmul.bf16.gmra.mxu0 %v88
    %v102 = vpop.f32.mrf.mxu0
    %v103 = vadd.f32 %v66, %v102
    %v104 = vpop.f32.mrf.mxu0
    %v105 = vadd.f32 %v71, %v104
    %106 = vmatmul.bf16.gmra.mxu0 %v91
    %v107 = vpop.f32.mrf.mxu0
    %v108 = vadd.f32 %v76, %v107
    %v109 = vpop.f32.mrf.mxu0
    %110 = vdwg.mxu0
    %111 = vmatpush.bf16.msra.mxu0 0
    %112 = vmatpush.bf16.msra.mxu0 0
    %113 = vmatpush.bf16.msra.mxu0 0
    %114 = vmatpush.bf16.msra.mxu0 0
    %115 = vmatpush.bf16.msra.mxu0 0
    %116 = vmatpush.bf16.msra.mxu0 0
    %117 = vmatpush.bf16.msra.mxu0 %v56
    %118 = vmatpush.bf16.msra.mxu0 %v54
    %119 = vmatmul.bf16.gmra.mxu0 %v88
    %v120 = vpop.f32.mrf.mxu0
    %v121 = vadd.f32 %v66, %v120
    %v122 = vpop.f32.mrf.mxu0
    %v123 = vadd.f32 %v71, %v122
    %124 = vmatmul.bf16.gmra.mxu0 %v91
    %v125 = vpop.f32.mrf.mxu0
    %v126 = vadd.f32 %v76, %v125
    %v127 = vpop.f32.mrf.mxu0
    %128 = vdwg.mxu0
    %v129 = vmul.f32 %v103, 0.5
    %v130 = vmul.f32 %v121, 0.5
    %v131 = vmul.f32 %v105, 0.5
    %v132 = vmul.f32 %v123, 0.5
    %v133 = vmul.f32 %v108, 0.5
    %v134 = vmul.f32 %v126, 0.5
    %v135 = vtanh.pop %v129
    %v136 = vtanh.pop %v130
    %v137 = vtanh.pop %v131
    %v138 = vtanh.pop %v132
    %v139 = vtanh.pop %v133
    %v140 = vtanh.pop %v134
    %v141 = vmul.f32 %v135, 0.5
    %v142 = vmul.f32 %v136, 0.5
    %v143 = vmul.f32 %v137, 0.5
    %v144 = vmul.f32 %v138, 0.5
    %v145 = vmul.f32 %v139, 0.5
    %v146 = vmul.f32 %v140, 0.5
    %v147 = vadd.f32 %v141, 0.5
    %v148 = vadd.f32 %v142, 0.5
    %v149 = vadd.f32 %v143, 0.5
    %v150 = vadd.f32 %v144, 0.5
    %v151 = vadd.f32 %v145, 0.5
    %v152 = vadd.f32 %v146, 0.5
    %v153 = vld [vmem:[%s3] sm:$0xff]
    %v154 = vld [vmem:[%s3 + $0x8] sm:$0x3]
    %v155 = vld [vmem:[%s4] sm:$0xff]
    %v156 = vld [vmem:[%s4 + $0x8] sm:$0x3]
    %158 = vset.pattern.permute.xlu0 0
    %159 = vperm.xlu0 %158, %v155
    %v160 = vpop.permute.xlu0 %159
    %163 = vset.pattern.permute.xlu0 0
    %164 = vperm.xlu0 %163, %v156
    %v165 = vpop.permute.xlu0 %164
    %vm167 = vcmask 162816
    %v169 = vsel %vm167, %v153, 0
    %v172 = vsel %vm167, %v154, 0
    %vm174 = vcmask 1043456
    %v176 = vsel %vm174, %v151, 0
    %v179 = vsel %vm174, %v152, 0
    %181 = vmatpush.msra.mxu0 0.0
    %182 = vmatpush.msra.mxu0 0.0
    %183 = vmatpush.msra.mxu0 0.0
    %184 = vmatpush.msra.mxu0 0.0
    %185 = vmatpush.msra.mxu0 0.0
    %186 = vmatpush.msra.mxu0 0.0
    %187 = vmatpush.msra.mxu0 0.0
    %188 = vmatpush.msra.mxu0 0.0
    %189 = vmatpush.msra.mxu0 0.0
    %190 = vmatpush.msra.mxu0 0.0
    %191 = vmatpush.msra.mxu0 0.0
    %192 = vmatpush.msra.mxu0 0.0
    %193 = vmatpush.msra.mxu0 0.0
    %194 = vmatpush.msra.mxu0 %v176
    %195 = vmatpush.msra.mxu0 %v149
    %196 = vmatpush.msra.mxu0 %v147
    %197 = vmatmul.f32.gmra.mxu0 %v169
    %v198 = vpop.f32.mrf.mxu0
    %v199 = vadd.f32 %v160, %v198
    %200 = vmatmul.f32.gmra.mxu0 %v172
    %v201 = vpop.f32.mrf.mxu0
    %v202 = vadd.f32 %v165, %v201
    %203 = vdwg.mxu0
    %204 = vmatpush.msra.mxu0 0.0
    %205 = vmatpush.msra.mxu0 0.0
    %206 = vmatpush.msra.mxu0 0.0
    %207 = vmatpush.msra.mxu0 0.0
    %208 = vmatpush.msra.mxu0 0.0
    %209 = vmatpush.msra.mxu0 0.0
    %210 = vmatpush.msra.mxu0 0.0
    %211 = vmatpush.msra.mxu0 0.0
    %212 = vmatpush.msra.mxu0 0.0
    %213 = vmatpush.msra.mxu0 0.0
    %214 = vmatpush.msra.mxu0 0.0
    %215 = vmatpush.msra.mxu0 0.0
    %216 = vmatpush.msra.mxu0 0.0
    %217 = vmatpush.msra.mxu0 %v179
    %218 = vmatpush.msra.mxu0 %v150
    %219 = vmatpush.msra.mxu0 %v148
    %220 = vmatmul.f32.gmra.mxu0 %v169
    %v221 = vpop.f32.mrf.mxu0
    %v222 = vadd.f32 %v160, %v221
    %223 = vmatmul.f32.gmra.mxu0 %v172
    %v224 = vpop.f32.mrf.mxu0
    %v225 = vadd.f32 %v165, %v224
    %226 = vdwg.mxu0
    %v227 = vmul.f32 %v199, 0.5
    %v228 = vmul.f32 %v222, 0.5
    %v229 = vmul.f32 %v202, 0.5
    %v230 = vmul.f32 %v225, 0.5
    %v231 = vtanh.pop %v227
    %v232 = vtanh.pop %v228
    %v233 = vtanh.pop %v229
    %v234 = vtanh.pop %v230
    %v235 = vmul.f32 %v231, 0.5
    %v236 = vmul.f32 %v232, 0.5
    %v237 = vmul.f32 %v233, 0.5
    %v238 = vmul.f32 %v234, 0.5
    %v239 = vadd.f32 %v235, 0.5
    %v240 = vadd.f32 %v236, 0.5
    %v241 = vadd.f32 %v237, 0.5
    %v242 = vadd.f32 %v238, 0.5
    %v243 = vld [vmem:[%s5] sm:$0xff]
    %v244 = vld [vmem:[%s5 + $0x8] sm:$0x3]
    %246 = vset.pattern.permute.xlu0 0
    %247 = vperm.xlu0 %246, %v243
    %v248 = vpop.permute.xlu0 %247
    %251 = vset.pattern.permute.xlu0 0
    %252 = vperm.xlu0 %251, %v244
    %v253 = vpop.permute.xlu0 %252
    %v255 = vmul.f32 %v239, %v248
    %v256 = vmul.f32 %v240, %v248
    %v257 = vmul.f32 %v241, %v253
    %v258 = vmul.f32 %v242, %v253
    %vm259 = vcmask 1041408
    %v260 = vsel %vm259, %v257, 0.0
    %v261 = vadd.f32 %v255, %v260
    %v262 = vrot.slane %v261, 4
    %v263 = vadd.f32 %v261, %v262
    %v264 = vrot.slane %v263, 2
    %v265 = vadd.f32 %v263, %v264
    %v266 = vrot.slane %v265, 1
    %v267 = vadd.f32 %v265, %v266
    %v268 = vsel %vm259, %v258, 0.0
    %v269 = vadd.f32 %v256, %v268
    %v270 = vrot.slane %v269, 4
    %v271 = vadd.f32 %v269, %v270
    %v272 = vrot.slane %v271, 2
    %v273 = vadd.f32 %v271, %v272
    %v274 = vrot.slane %v273, 1
    %v275 = vadd.f32 %v273, %v274
    %s276 = sld [smem:[#allocation2]]
    %v277 = vstv %s276
    %v278 = vadd.f32 %v267, %v277
    %v279 = vadd.f32 %v275, %v277
    %v280 = vmul.f32 %v278, 0.5
    %v281 = vmul.f32 %v279, 0.5
    %v282 = vtanh.pop %v280
    %v283 = vtanh.pop %v281
    %v284 = vmul.f32 %v282, 0.5
    %v285 = vmul.f32 %v283, 0.5
    %v286 = vadd.f32 %v284, 0.5
    %v287 = vadd.f32 %v285, 0.5
    %v290 = vrot.slane %v287, 7
    %vm291 = vcmask 1040384
    %v292 = vsel %vm291, %v286, %v290
    %v294 = vlaneseq
    %vm295 = vcmp.ge.s32.totalorder %v294, 0
    %vm296 = vcmp.lt.s32.totalorder %v294, 256
    %vm297 = vmand %vm295, %vm296
    %298 = vst.msk [vmem:[#allocation6] sm:$0x3] %vm297, %v292
    // Predicated region
    $region34: #{tpu_custom_call.1} parent=1 // pred_check
      _
    $region35: #{tpu_custom_call.1} parent=1 // pred_check_branch
      %300 = sbr.rel (0) target = $region37
    $region36: #{tpu_custom_call.1} parent=1 // pred_region
      %302 = vsyncadd [#allocation5], 0
      %s304 = sshll.u32 [#allocation6], 4
      %s305 = int_to_ptr.vmem [resolvable:$true] %s304
      %s306 = sshll.u32 %s7, 4
      %s307 = int_to_ptr.hbm [resolvable:$true] %s306
      %309 = dma.vmem_to_hbm [thread:$0]  %s305, 32, %s307, [#allocation5]
    $region37: #{tpu_custom_call.1} parent=1 // pred_fallthru
      _
    // Predicated region
    $region38: #{tpu_custom_call.1} parent=1 // pred_check
      _
    $region39: #{tpu_custom_call.1} parent=1 // pred_check_branch
      %311 = sbr.rel (0) target = $region41
    $region40: #{tpu_custom_call.1} parent=1 // pred_region
      %313 = dma.done [#allocation5], 32
    $region41: #{tpu_custom_call.1} parent=1 // pred_fallthru
      _
    %314 = vsyncpa [#allocation4], 1
    %315 = vsyncpa [#allocation5], 1

</llo_original>
